<compile_context>
chip_gen: v6e
topology: v6e:2x2x1
jax: 0.10.0
libtpu: 0.0.40
codegen_flags: <defaults>
</compile_context>

<pallas_src>
import functools
import math

import jax
import jax.numpy as jnp
from jax import lax
from jax.experimental import pallas as pl
from jax.experimental.pallas import tpu as pltpu


# ------------------------------- kernels -------------------------------------


def _mm_accumulate(x_ref, w_ref, acc_ref, *, k_total, tk, mask_k, compute_dtype):
    """One K-step of acc[m, n] += sum_k x[m, k] * w[n, k] (f32 accumulation)."""
    k = pl.program_id(2)

    @pl.when(k == 0)
    def _init():
        acc_ref[...] = jnp.zeros_like(acc_ref)

    x = x_ref[...]
    w = w_ref[...]

    if mask_k:
        # K does not divide tk: zero the out-of-bounds K lanes of BOTH operands
        # (edge-block OOB reads are undefined and could contain NaN/Inf).
        kk = k * tk + lax.broadcasted_iota(jnp.int32, (1, tk), 1)
        valid = kk < k_total
        x = jnp.where(valid, x, jnp.zeros_like(x))
        w = jnp.where(valid, w, jnp.zeros_like(w))

    if compute_dtype is not None:
        x = x.astype(compute_dtype)
        w = w.astype(compute_dtype)
    elif x.dtype != w.dtype:
        dt = jnp.promote_types(x.dtype, w.dtype)
        x = x.astype(dt)
        w = w.astype(dt)

    # Weight kept in PyTorch (N, K) layout; contract the last dim of both operands.
    acc_ref[...] += lax.dot_general(
        x, w,
        dimension_numbers=(((1,), (1,)), ((), ())),
        preferred_element_type=jnp.float32,
    )


def _linear_bias_kernel(x_ref, w_ref, b_ref, o_ref, acc_ref, *,
                        k_total, tk, mask_k, compute_dtype):
    _mm_accumulate(x_ref, w_ref, acc_ref, k_total=k_total, tk=tk,
                   mask_k=mask_k, compute_dtype=compute_dtype)

    @pl.when(pl.program_id(2) == pl.num_programs(2) - 1)
    def _finalize():
        o_ref[...] = (acc_ref[...] + b_ref[...].astype(jnp.float32)).astype(o_ref.dtype)


def _linear_nobias_kernel(x_ref, w_ref, o_ref, acc_ref, *,
                          k_total, tk, mask_k, compute_dtype):
    _mm_accumulate(x_ref, w_ref, acc_ref, k_total=k_total, tk=tk,
                   mask_k=mask_k, compute_dtype=compute_dtype)

    @pl.when(pl.program_id(2) == pl.num_programs(2) - 1)
    def _finalize():
        o_ref[...] = acc_ref[...].astype(o_ref.dtype)


# ------------------------ tiling / budgeting helpers --------------------------


def _round_up(v: int, m: int) -> int:
    return ((v + m - 1) // m) * m


def _cdiv(a: int, b: int) -> int:
    return -(-a // b)


def _sublane_granule(dtype) -> int:
    """Sub-32-bit dtypes pack along sublanes: bf16 vreg = 16x128, int8/fp8 = 32x128."""
    bits = jnp.dtype(dtype).itemsize * 8
    if bits >= 32:
        return 8
    if bits == 16:
        return 16
    return 32


def _vmem_capacity_bytes() -> int:
    try:
        cap = getattr(pltpu.get_tpu_info(), "vmem_capacity_bytes", None)
        if cap:
            return int(cap)
    except Exception:
        pass
    return 64 * 1024 * 1024  # conservative (v7x-sized) fallback


def _pick_lane_tile(dim: int, target: int) -> int:
    """Lane-dim tile: full-dim for tiny dims, else 128-aligned (preferring
    256-multiples for the 2x256^2 MXU), never past one 128-aligned tile of dim."""
    dim, target = int(dim), int(target)
    if dim <= 128:
        return dim  # full-dim block is exempt from the (8, 128) alignment rule
    cap = _round_up(dim, 128)
    g = 256 if (target >= 256 and cap >= 256) else 128
    return min(_round_up(min(target, cap), g), cap)


def _pick_sublane_tile(dim: int, target: int, granule: int) -> int:
    dim, target = int(dim), int(target)
    if dim <= granule:
        return dim
    cap = _round_up(dim, granule)
    return min(_round_up(min(target, cap), granule), cap)


# --------------------------------- wrapper ------------------------------------


@functools.partial(
    jax.jit, static_argnames=("tile_m", "tile_n", "tile_k", "compute_dtype"))
def advanced_linear(x, weight, bias=None, *, tile_m=None, tile_n=None,
                    tile_k=None, compute_dtype=None):
    """F.linear semantics: x (..., K), weight (N, K), bias (N,) or None."""
    N, K = weight.shape
    orig_shape = x.shape
    x2d = x.reshape(-1, K)
    M = x2d.shape[0]
    has_bias = bias is not None

    x_isz = jnp.dtype(x.dtype).itemsize
    w_isz = jnp.dtype(weight.dtype).itemsize
    o_isz = x_isz
    b_isz = jnp.dtype(bias.dtype).itemsize if has_bias else 0

    sub_g = _sublane_granule(x.dtype)
    cap_bytes = _vmem_capacity_bytes()
    budget = int(0.8 * cap_bytes)  # generation-aware (51 MiB on v7x, 102 MiB v5e/v6e)

    # ---- tile selection: generous targets, VMEM-budgeted, alignment-aware -----
    tm = _pick_sublane_tile(M, tile_m if tile_m is not None else 512, sub_g)
    tn = _pick_lane_tile(N, tile_n if tile_n is not None else 1024)
    tk = _pick_lane_tile(K, tile_k if tile_k is not None else 1024)

    def vmem_need(tm_, tn_, tk_):
        need = 2 * tm_ * tk_ * x_isz          # double-buffered x blocks
        need += 2 * tn_ * tk_ * w_isz         # double-buffered W blocks
        need += 2 * tm_ * tn_ * o_isz         # double-buffered output blocks
        need += tm_ * tn_ * 4                 # f32 accumulator scratch
        if has_bias:
            need += 2 * tn_ * b_isz
        return need

    for _ in range(64):
        if vmem_need(tm, tn, tk) <= budget:
            break
        opts = []
        if tile_k is None and K > 128 and tk > 128:
            opts.append(("k", 2 * tk * (tm * x_isz + tn * w_isz)))
        if tile_n is None and N > 128 and tn > 128:
            opts.append(("n", tn * (2 * tk * w_isz + tm * (2 * o_isz + 4))))
        if tile_m is None and M > sub_g and tm > sub_g:
            opts.append(("m", tm * (2 * tk * x_isz + tn * (2 * o_isz + 4))))
        if not opts:
            break
        which = max(opts, key=lambda kv: kv[1])[0]
        if which == "k":
            tk = _pick_lane_tile(K, max(128, tk // 2))
        elif which == "n":
            tn = _pick_lane_tile(N, max(128, tn // 2))
        else:
            tm = _pick_sublane_tile(M, max(sub_g, tm // 2), sub_g)

    # v7x has two TensorCores: if the whole problem fits one (M, N) block, split a
    # parallel axis so both cores get work (one extra tiny grid step on v5e/v6e).
    if _cdiv(M, tm) == 1 and _cdiv(N, tn) == 1:
        if tile_n is None and N > 128 and tn > 128:
            tn = _pick_lane_tile(N, max(128, _round_up(_cdiv(N, 2), 128)))
        elif tile_m is None and M > sub_g and tm > sub_g:
            tm = _pick_sublane_tile(M, max(sub_g, _round_up(_cdiv(M, 2), sub_g)), sub_g)

    grid = (_cdiv(M, tm), _cdiv(N, tn), _cdiv(K, tk))
    mask_k = (K % tk) != 0

    x_spec = pl.BlockSpec((tm, tk), lambda i, j, k: (i, k))
    w_spec = pl.BlockSpec((tn, tk), lambda i, j, k: (j, k))   # weight stays (N, K)
    b_spec = pl.BlockSpec((1, tn), lambda i, j, k: (0, j))
    o_spec = pl.BlockSpec((tm, tn), lambda i, j, k: (i, j))

    need = vmem_need(tm, tn, tk)
    vmem_limit = int(min(max(int(1.3 * need), 32 * 1024 * 1024), int(0.9 * cap_bytes)))
    vmem_limit = int(max(vmem_limit, need))  # never below what the tiles require

    cost = pl.CostEstimate(
        flops=2 * M * N * K,
        transcendentals=0,
        bytes_accessed=int(
            M * K * x_isz * grid[1]       # x is re-streamed once per N tile
            + N * K * w_isz * grid[0]     # W is re-streamed once per M tile
            + M * N * o_isz
            + (N * b_isz if has_bias else 0)
        ),
    )

    compiler_params = pltpu.CompilerParams(
        dimension_semantics=("parallel", "parallel", "arbitrary"),
        vmem_limit_bytes=vmem_limit,
    )

    kern_kwargs = dict(k_total=K, tk=tk, mask_k=mask_k, compute_dtype=compute_dtype)
    if has_bias:
        kernel = functools.partial(_linear_bias_kernel, **kern_kwargs)
        in_specs = [x_spec, w_spec, b_spec]
        operands = (x2d, weight, bias.reshape(1, N))
    else:
        kernel = functools.partial(_linear_nobias_kernel, **kern_kwargs)
        in_specs = [x_spec, w_spec]
        operands = (x2d, weight)

    out2d = pl.pallas_call(
        kernel,
        out_shape=jax.ShapeDtypeStruct((M, N), x.dtype),
        grid_spec=pltpu.PrefetchScalarGridSpec(
            num_scalar_prefetch=0,
            grid=grid,
            in_specs=in_specs,
            out_specs=o_spec,
            scratch_shapes=[pltpu.VMEM((tm, tn), jnp.float32)],
        ),
        compiler_params=compiler_params,
        cost_estimate=cost,
    )(*operands)

    return out2d.reshape(*orig_shape[:-1], N)


if __name__ == "__main__":
    key = jax.random.PRNGKey(0)
    kx, kw, kb, kx2, kw2 = jax.random.split(key, 5)

    # Test 1: typical module call — (batch, seq, in_features) with bias.
    batch, seq, in_features, out_features = 2, 8, 32, 64
    x = jax.random.normal(kx, (batch, seq, in_features), dtype=jnp.float32)
    bound = 1.0 / math.sqrt(in_features)
    weight = jax.random.uniform(
        kw, (out_features, in_features), minval=-bound, maxval=bound, dtype=jnp.float32)
    bias = jax.random.uniform(
        kb, (out_features,), minval=-bound, maxval=bound, dtype=jnp.float32)

    out = advanced_linear(x, weight, bias)
    jax.block_until_ready(out)
    ref = jnp.einsum("bsk,nk->bsn", x, weight,
                     precision=jax.lax.Precision.HIGHEST) + bias
    assert out.shape == (batch, seq, out_features)
    assert jnp.allclose(out, ref, atol=1e-3, rtol=1e-3)

    # Test 2: non-aligned dims exercise the in-kernel K-tail mask and M/N edge
    # blocks (no host-side padding of x or W), bias-free path.
    b2, s2, k2, n2 = 2, 10, 200, 160
    x2 = jax.random.normal(kx2, (b2, s2, k2), dtype=jnp.float32)
    w2 = jax.random.normal(kw2, (n2, k2), dtype=jnp.float32) * 0.05
    out2 = advanced_linear(x2, w2, None)
    jax.block_until_ready(out2)
    ref2 = jnp.einsum("bsk,nk->bsn", x2, w2, precision=jax.lax.Precision.HIGHEST)
    assert out2.shape == (b2, s2, n2)
    assert jnp.allclose(out2, ref2, atol=5e-3, rtol=5e-3)

    # Test 3: opt-in bf16 compute (f32 accumulate), looser tolerance.
    out3 = advanced_linear(x, weight, bias, compute_dtype=jnp.bfloat16)
    jax.block_until_ready(out3)
    assert jnp.allclose(out3, ref, atol=5e-2, rtol=5e-2)

    print("KERNEL_OK")
</pallas_src>

<mosaic_0001>
module attributes {stable_mosaic.version = 11 : i64} {
  func.func @_linear_bias_kernel(%arg0: i32, %arg1: i32, %arg2: i32, %arg3: memref<8x32xf32, #tpu.memory_space<vmem>>, %arg4: memref<64x32xf32, #tpu.memory_space<vmem>>, %arg5: memref<1x64xf32, #tpu.memory_space<vmem>>, %arg6: memref<8x64xf32, #tpu.memory_space<vmem>>, %arg7: memref<8x64xf32, #tpu.memory_space<vmem>>) attributes {dimension_semantics = [#tpu.dimension_semantics<parallel>, #tpu.dimension_semantics<parallel>, #tpu.dimension_semantics<arbitrary>], iteration_bounds = array<i64: 2, 1, 1>, scalar_prefetch = 0 : i64, scratch_operands = 1 : i64, tpu.core_type = #tpu.core_type<tc>, window_params = [{transform_indices = @transform_0, window_bounds = array<i64: 8, 32>}, {transform_indices = @transform_1, window_bounds = array<i64: 64, 32>}, {transform_indices = @transform_2, window_bounds = array<i64: 1, 64>}, {transform_indices = @transform_3, window_bounds = array<i64: 8, 64>}]} {
    %c0_i32 = arith.constant 0 : i32
    %0 = arith.cmpi eq, %arg2, %c0_i32 : i32
    %1 = arith.extui %0 : i1 to i32
    %c0_i32_0 = arith.constant 0 : i32
    %2 = arith.cmpi ne, %1, %c0_i32_0 : i32
    scf.if %2 {
      %cst_10 = arith.constant 0.000000e+00 : f32
      %12 = vector.broadcast %cst_10 : f32 to vector<8x64xf32>
      %c0_11 = arith.constant 0 : index
      %c0_12 = arith.constant 0 : index
      %13 = vector.load %arg7[%c0_11, %c0_12] : memref<8x64xf32, #tpu.memory_space<vmem>>, vector<8x64xf32>
      tpu.vector_store %arg7[%c0_11, %c0_12], %12 {strides = array<i32>} : memref<8x64xf32, #tpu.memory_space<vmem>>, vector<8x64xf32>,
    } else {
    }
    %c0 = arith.constant 0 : index
    %c0_1 = arith.constant 0 : index
    %3 = vector.load %arg3[%c0, %c0_1] : memref<8x32xf32, #tpu.memory_space<vmem>>, vector<8x32xf32>
    %c0_2 = arith.constant 0 : index
    %c0_3 = arith.constant 0 : index
    %4 = vector.load %arg4[%c0_2, %c0_3] : memref<64x32xf32, #tpu.memory_space<vmem>>, vector<64x32xf32>
    %c0_4 = arith.constant 0 : index
    %c0_5 = arith.constant 0 : index
    %5 = vector.load %arg7[%c0_4, %c0_5] : memref<8x64xf32, #tpu.memory_space<vmem>>, vector<8x64xf32>
    %cst = arith.constant dense<0.000000e+00> : vector<8x64xf32>
    %6 = tpu.matmul %3, %4, %cst {dimension_numbers = #tpu.dot_dimension_numbers<[1], [1], [0], [0], [0, 0, 1, 0], [], []>} : vector<8x32xf32>, vector<64x32xf32>, vector<8x64xf32> -> vector<8x64xf32>
    %7 = arith.addf %5, %6 : vector<8x64xf32>
    %c0_6 = arith.constant 0 : index
    %c0_7 = arith.constant 0 : index
    %8 = vector.load %arg7[%c0_6, %c0_7] : memref<8x64xf32, #tpu.memory_space<vmem>>, vector<8x64xf32>
    tpu.vector_store %arg7[%c0_6, %c0_7], %7 {strides = array<i32>} : memref<8x64xf32, #tpu.memory_space<vmem>>, vector<8x64xf32>,
    %c0_i32_8 = arith.constant 0 : i32
    %9 = arith.cmpi eq, %arg2, %c0_i32_8 : i32
    %10 = arith.extui %9 : i1 to i32
    %c0_i32_9 = arith.constant 0 : i32
    %11 = arith.cmpi ne, %10, %c0_i32_9 : i32
    scf.if %11 {
      %c0_10 = arith.constant 0 : index
      %c0_11 = arith.constant 0 : index
      %12 = vector.load %arg7[%c0_10, %c0_11] : memref<8x64xf32, #tpu.memory_space<vmem>>, vector<8x64xf32>
      %c0_12 = arith.constant 0 : index
      %c0_13 = arith.constant 0 : index
      %13 = vector.load %arg5[%c0_12, %c0_13] : memref<1x64xf32, #tpu.memory_space<vmem>>, vector<1x64xf32>
      %14 = vector.broadcast %13 : vector<1x64xf32> to vector<8x64xf32>
      %15 = arith.addf %12, %14 : vector<8x64xf32>
      %c0_14 = arith.constant 0 : index
      %c0_15 = arith.constant 0 : index
      %16 = vector.load %arg6[%c0_14, %c0_15] : memref<8x64xf32, #tpu.memory_space<vmem>>, vector<8x64xf32>
      tpu.vector_store %arg6[%c0_14, %c0_15], %15 {strides = array<i32>} : memref<8x64xf32, #tpu.memory_space<vmem>>, vector<8x64xf32>,
    } else {
    }
    return
  }
  func.func @transform_0(%arg0: i32, %arg1: i32, %arg2: i32) -> (i32, i32) {
    %c0_i32 = arith.constant 0 : i32
    return %arg0, %arg2 : i32, i32
  }
  func.func @transform_1(%arg0: i32, %arg1: i32, %arg2: i32) -> (i32, i32) {
    %c0_i32 = arith.constant 0 : i32
    return %arg1, %arg2 : i32, i32
  }
  func.func @transform_2(%arg0: i32, %arg1: i32, %arg2: i32) -> (i32, i32) {
    %c0_i32 = arith.constant 0 : i32
    %c0_i32_0 = arith.constant 0 : i32
    return %c0_i32, %arg1 : i32, i32
  }
  func.func @transform_3(%arg0: i32, %arg1: i32, %arg2: i32) -> (i32, i32) {
    %c0_i32 = arith.constant 0 : i32
    return %arg0, %arg1 : i32, i32
  }
}

</mosaic_0001>

<llo_original>
// kernel: advanced_linear.1
$region0: #{advanced_linear.1}
  #allocation0 [shape = 'u32[]', space=smem, size = 0x4, offset = 0x4, fixed_abs, tag = 'smem constant byte address 0x4 - core index']
  #allocation1 [shape = 'u32[144,128]{1,0:T(1,128)}', space=vmem, size = 0x12000, scoped, tag = 'internal scratch']
  #allocation2 [shape = 'f32[8,64]{1,0:T(8,128)}', space=vmem, size = 0x1000, scoped, tag = 'scratch operand']
  %s0 = inlined_call_operand.vmem [shape: f32[16,32], index: 0, kind: input, shape index: {}]
  %s1 = inlined_call_operand.vmem [shape: f32[64,32], index: 1, kind: input, shape index: {}]
  %s2 = inlined_call_operand.vmem [shape: f32[1,64], index: 2, kind: input, shape index: {}]
  %s3 = inlined_call_operand.hbm [shape: f32[16,64], index: 3, kind: output, shape index: {}]
  %s4 = sld [smem:[#allocation0]]
  $region53: #{advanced_linear.1} parent=0
    _
  %s6 = ssub.s32 1, %s4
  %s7 = scalar_select 0, %s6, %s4
  $region1: #{advanced_linear.1} parent=0
    #allocation3 [shape = 'u8[8192]{0}', space=vmem, size = 0x2000, scoped, tag = 'output window, operand 0']
    #allocation4 [shape = 's32[2]{0}', space=sflag, size = 0x8, scoped, tag = 'scoped memory for advanced_linear.1']
    %8 = vsyncpa [#allocation4], 0
    %s9 = scalar_lea.sflag [#allocation4], 1
    %10 = vsyncpa %s9, 0
    loop: start=0, step=1, limit=4
    $region2: #{advanced_linear.1} parent=1 // loop_pre_header
      _
    $region3: #{advanced_linear.1} parent=1 // loop_header
      %s12 = sphi 0, %s16
      %p13 = scmp.ge.s32.totalorder %s12, 4
      %s19 = sphi 0, %s38
      %s20 = sphi 0, %s34
      %s21 = sphi 0, %s30
      %s22 = sphi 0, %s19
      %s23 = sphi 0, %s20
      %s24 = sphi 0, %s21
      %s25 = sphi 0, %s22
      %s26 = sphi 0, %s23
      %s27 = sphi 0, %s24
      %s43 = sphi 0, %s45
      %s46 = sphi 0, %s43
      %s47 = sphi 0, %s46
      %s63 = sphi 0, %s47
      %s71 = sphi 0, %s73
      %s74 = sphi 0, %s71
      %s75 = sphi 0, %s74
      %s91 = sphi 0, %s75
      %s97 = sphi 0, %s99
      %s100 = sphi 0, %s97
      %s101 = sphi 0, %s100
      %s117 = sphi 0, %s101
      %s125 = sphi 0, %s127
      %s128 = sphi 0, %s125
      %s129 = sphi 0, %s128
      %s145 = sphi 0, %s129
    $region4: #{advanced_linear.1} parent=1 // loop_header_branch
      %15 = sbr.rel (%p13) target = $region8
    $region5: #{advanced_linear.1} parent=1 // loop_body
      %s17 = ssub.s32 %s12, 1
      %s18 = ssub.s32 %s12, 2
      %s28 = sadd.s32 1, %s21
      %p29 = scmp.ge.s32.totalorder %s28, 1
      %s30 = scalar_select %p29, 0, %s28
      %s31 = sadd.s32 1, %s20
      %s32 = scalar_select %p29, %s31, %s20
      %p33 = scmp.ge.s32.totalorder %s32, 1
      %s34 = scalar_select %p33, 0, %s32
      %s35 = sadd.s32 1, %s19
      %s36 = scalar_select %p33, %s35, %s19
      %p37 = scmp.ge.s32.totalorder %s36, 2
      %s38 = scalar_select %p37, 0, %s36
      %s39 = ssub.s32 %s19, %s38
      %s40 = ssub.s32 %s21, %s30
      %s41 = sor.u32 %s39, %s40
      %p42 = scmp.eq.s32.totalorder %s41, 0
      %s44 = sadd.s32 %s43, 1
      %s45 = scalar_select %p42, %s43, %s44
      %p48 = pneg %p42
      %p49 = scmp.eq.s32.totalorder %s12, 1
      %p50 = por %p48, %p49
      %p51 = scmp.ne.s32.totalorder %s43, %s46
      %p52 = scmp.eq.s32.totalorder %s12, 0
      %p53 = por %p51, %p52
      %p54 = scmp.ne.s32.totalorder %s43, %s46
      %p55 = scmp.eq.s32.totalorder %s17, 1
      %p56 = por %p54, %p55
      %p57 = scmp.ne.s32.totalorder %s46, %s47
      %p58 = scmp.eq.s32.totalorder %s17, 0
      %p59 = por %p57, %p58
      %p60 = scmp.ne.s32.totalorder %s46, %s47
      %p61 = scmp.eq.s32.totalorder %s18, 1
      %p62 = por %p60, %p61
      %p64 = scmp.ne.s32.totalorder %s47, %s63
      %p65 = scmp.eq.s32.totalorder %s18, 0
      %p66 = por %p64, %p65
      %s67 = ssub.s32 %s20, %s34
      %s68 = ssub.s32 %s21, %s30
      %s69 = sor.u32 %s67, %s68
      %p70 = scmp.eq.s32.totalorder %s69, 0
      %s72 = sadd.s32 %s71, 1
      %s73 = scalar_select %p70, %s71, %s72
      %p76 = pneg %p70
      %p77 = scmp.eq.s32.totalorder %s12, 1
      %p78 = por %p76, %p77
      %p79 = scmp.ne.s32.totalorder %s71, %s74
      %p80 = scmp.eq.s32.totalorder %s12, 0
      %p81 = por %p79, %p80
      %p82 = scmp.ne.s32.totalorder %s71, %s74
      %p83 = scmp.eq.s32.totalorder %s17, 1
      %p84 = por %p82, %p83
      %p85 = scmp.ne.s32.totalorder %s74, %s75
      %p86 = scmp.eq.s32.totalorder %s17, 0
      %p87 = por %p85, %p86
      %p88 = scmp.ne.s32.totalorder %s74, %s75
      %p89 = scmp.eq.s32.totalorder %s18, 1
      %p90 = por %p88, %p89
      %p92 = scmp.ne.s32.totalorder %s75, %s91
      %p93 = scmp.eq.s32.totalorder %s18, 0
      %p94 = por %p92, %p93
      %s95 = ssub.s32 %s20, %s34
      %p96 = scmp.eq.s32.totalorder %s95, 0
      %s98 = sadd.s32 %s97, 1
      %s99 = scalar_select %p96, %s97, %s98
      %p102 = pneg %p96
      %p103 = scmp.eq.s32.totalorder %s12, 1
      %p104 = por %p102, %p103
      %p105 = scmp.ne.s32.totalorder %s97, %s100
      %p106 = scmp.eq.s32.totalorder %s12, 0
      %p107 = por %p105, %p106
      %p108 = scmp.ne.s32.totalorder %s97, %s100
      %p109 = scmp.eq.s32.totalorder %s17, 1
      %p110 = por %p108, %p109
      %p111 = scmp.ne.s32.totalorder %s100, %s101
      %p112 = scmp.eq.s32.totalorder %s17, 0
      %p113 = por %p111, %p112
      %p114 = scmp.ne.s32.totalorder %s100, %s101
      %p115 = scmp.eq.s32.totalorder %s18, 1
      %p116 = por %p114, %p115
      %p118 = scmp.ne.s32.totalorder %s101, %s117
      %p119 = scmp.eq.s32.totalorder %s18, 0
      %p120 = por %p118, %p119
      %s121 = ssub.s32 %s19, %s38
      %s122 = ssub.s32 %s20, %s34
      %s123 = sor.u32 %s121, %s122
      %p124 = scmp.eq.s32.totalorder %s123, 0
      %s126 = sadd.s32 %s125, 1
      %s127 = scalar_select %p124, %s125, %s126
      %p130 = pneg %p124
      %p131 = scmp.eq.s32.totalorder %s12, 1
      %p132 = por %p130, %p131
      %p133 = scmp.ne.s32.totalorder %s125, %s128
      %p134 = scmp.eq.s32.totalorder %s12, 0
      %p135 = por %p133, %p134
      %p136 = scmp.ne.s32.totalorder %s125, %s128
      %p137 = scmp.eq.s32.totalorder %s17, 1
      %p138 = por %p136, %p137
      %p139 = scmp.ne.s32.totalorder %s128, %s129
      %p140 = scmp.eq.s32.totalorder %s17, 0
      %p141 = por %p139, %p140
      %p142 = scmp.ne.s32.totalorder %s128, %s129
      %p143 = scmp.eq.s32.totalorder %s18, 1
      %p144 = por %p142, %p143
      %p146 = scmp.ne.s32.totalorder %s129, %s145
      %p147 = scmp.eq.s32.totalorder %s18, 0
      %p148 = por %p146, %p147
      %p149 = scmp.le.s32.totalorder 1, %s12
      %p150 = scmp.lt.s32.totalorder %s12, 3
      %p151 = pnand %p149, %p150
      %p152 = pneg %p151
      // Predicated region
      $region9: #{advanced_linear.1} parent=5 // pred_check
        _
      $region10: #{advanced_linear.1} parent=5 // pred_check_branch
        %154 = sbr.rel (%p151) target = $region12
      $region11: #{advanced_linear.1} parent=5 // pred_region
        %s155 = ssub.s32 %s12, 1
        // Predicated region
        $region13: #{advanced_linear.1} parent=11 // pred_check
          %p156 = pneg %p87
        $region14: #{advanced_linear.1} parent=11 // pred_check_branch
          %158 = sbr.rel (%p156) target = $region16
        $region15: #{advanced_linear.1} parent=11 // pred_region
          %s159 = smul.u32 8, %s23
          %p160 = scmp.lt.s32.totalorder %s159, 7
          %s161 = scalar_select %p160, %s159, 7
          %p162 = scmp.lt.s32.totalorder %s24, 0
          %s163 = scalar_select %p162, %s24, 0
          %s164 = sadd.s32 %s163, %s161
          %s165 = smul.addr %s164, 8
          %s166 = scalar_lea.vmem %s1, %s165
          %s167 = smul.u32 8, %s23
        $region16: #{advanced_linear.1} parent=11 // pred_fallthru
          _
        // Predicated region
        $region17: #{advanced_linear.1} parent=11 // pred_check
          %p168 = pneg %p113
        $region18: #{advanced_linear.1} parent=11 // pred_check_branch
          %170 = sbr.rel (%p168) target = $region20
        $region19: #{advanced_linear.1} parent=11 // pred_region
          %p171 = scmp.lt.s32.totalorder %s23, 0
          %s172 = scalar_select %p171, %s23, 0
          %s173 = scalar_lea.vmem %s2, %s172
        $region20: #{advanced_linear.1} parent=11 // pred_fallthru
          _
      $region12: #{advanced_linear.1} parent=5 // pred_fallthru
        _
      %p174 = scmp.lt.s32.totalorder %s12, 2
      // Predicated region
      $region21: #{advanced_linear.1} parent=5 // pred_check
        %p175 = pneg %p174
      $region22: #{advanced_linear.1} parent=5 // pred_check_branch
        %177 = sbr.rel (%p175) target = $region24
      $region23: #{advanced_linear.1} parent=5 // pred_region
        // Predicated region
        $region25: #{advanced_linear.1} parent=23 // pred_check
          %p178 = pneg %p53
        $region26: #{advanced_linear.1} parent=23 // pred_check_branch
          %180 = sbr.rel (%p178) target = $region28
        $region27: #{advanced_linear.1} parent=23 // pred_region
          %p181 = scmp.lt.s32.totalorder %s19, 1
          %s182 = scalar_select %p181, %s19, 1
          %p183 = scmp.lt.s32.totalorder %s21, 0
          %s184 = scalar_select %p183, %s21, 0
          %s185 = sadd.s32 %s184, %s182
          %s186 = smul.addr %s185, 8
          %s187 = scalar_lea.vmem %s0, %s186
        $region28: #{advanced_linear.1} parent=23 // pred_fallthru
          _
      $region24: #{advanced_linear.1} parent=5 // pred_fallthru
        _
      %p188 = scmp.le.s32.totalorder 1, %s12
      %p189 = scmp.lt.s32.totalorder %s12, 3
      %p190 = pnand %p188, %p189
      %p191 = pneg %p190
      // Predicated region
      $region29: #{advanced_linear.1} parent=5 // pred_check
        _
      $region30: #{advanced_linear.1} parent=5 // pred_check_branch
        %193 = sbr.rel (%p190) target = $region32
      $region31: #{advanced_linear.1} parent=5 // pred_region
        %s194 = ssub.s32 %s12, 1
        %p195 = scmp.lt.s32.totalorder %s22, 1
        %s196 = scalar_select %p195, %s22, 1
        %p197 = scmp.lt.s32.totalorder %s24, 0
        %s198 = scalar_select %p197, %s24, 0
        %s199 = sadd.s32 %s198, %s196
        %s200 = smul.addr %s199, 8
        %s201 = scalar_lea.vmem %s0, %s200
        %p202 = pneg %p59
        %p203 = pneg %p56
        %s204 = smul.u32 8, %s23
        %p205 = scmp.lt.s32.totalorder %s204, 7
        %s206 = scalar_select %p205, %s204, 7
        %p207 = scmp.lt.s32.totalorder %s24, 0
        %s208 = scalar_select %p207, %s24, 0
        %s209 = sadd.s32 %s208, %s206
        %s210 = smul.addr %s209, 8
        %s211 = scalar_lea.vmem %s1, %s210
        %p212 = pneg %p87
        %p213 = pneg %p84
        %p214 = scmp.lt.s32.totalorder %s23, 0
        %s215 = scalar_select %p214, %s23, 0
        %s216 = scalar_lea.vmem %s2, %s215
        %p217 = pneg %p113
        %p218 = pneg %p110
        %p219 = pneg %p141
        %p220 = pneg %p138
        %s221 = sand.u32 %s128, 1
        %s222 = scalar_lea.sflag [#allocation4], %s221
        %s223 = sand.u32 %s128, 1
        %s224 = smul.addr %s223, 8
        %s225 = scalar_lea.vmem [#allocation3], %s224
        %p226 = scmp.lt.s32.totalorder %s22, 1
        %s227 = scalar_select %p226, %s22, 1
        %p228 = scmp.lt.s32.totalorder %s24, 0
        %s229 = scalar_select %p228, %s24, 0
        %s230 = sadd.s32 %s229, %s227
        %s231 = smul.addr %s230, 8
        %s232 = scalar_lea.vmem %s0, %s231
        %s233 = smul.u32 8, %s23
        %p234 = scmp.lt.s32.totalorder %s233, 7
        %s235 = scalar_select %p234, %s233, 7
        %p236 = scmp.lt.s32.totalorder %s24, 0
        %s237 = scalar_select %p236, %s24, 0
        %s238 = sadd.s32 %s237, %s235
        %s239 = smul.addr %s238, 8
        %s240 = scalar_lea.vmem %s1, %s239
        %s241 = smul.u32 8, %s23
        %p242 = scmp.lt.s32.totalorder %s23, 0
        %s243 = scalar_select %p242, %s23, 0
        %s244 = scalar_lea.vmem %s2, %s243
        %p245 = scmp.eq.s32.totalorder %s24, 0
        // Predicated region
        $region33: #{advanced_linear.1} parent=31 // pred_check
          %p246 = pneg %p245
        $region34: #{advanced_linear.1} parent=31 // pred_check_branch
          %248 = sbr.rel (%p246) target = $region36
        $region35: #{advanced_linear.1} parent=31 // pred_region
          %vm249 = vcmask 523264
          %250 = vst.msk [vmem:[#allocation2] sm:$0xff] %vm249, 0.0
        $region36: #{advanced_linear.1} parent=31 // pred_fallthru
          _
        %v251 = vld [vmem:[%s232] sm:$0xff]
        %v252 = vld [vmem:[%s240] sm:$0xff]
        %v253 = vld [vmem:[%s240 + $0x8] sm:$0xff]
        %v254 = vld [vmem:[%s240 + $0x10] sm:$0xff]
        %v255 = vld [vmem:[%s240 + $0x18] sm:$0xff]
        %v256 = vld [vmem:[%s240 + $0x20] sm:$0xff]
        %v257 = vld [vmem:[%s240 + $0x28] sm:$0xff]
        %v258 = vld [vmem:[%s240 + $0x30] sm:$0xff]
        %v259 = vld [vmem:[%s240 + $0x38] sm:$0xff]
        %v260 = vld [vmem:[#allocation2] sm:$0xff]
        %vm261 = vcmask 261120
        %v263 = vsel %vm261, %v251, 0
        %v266 = vsel %vm261, %v252, 0
        %v269 = vsel %vm261, %v253, 0
        %v272 = vsel %vm261, %v254, 0
        %v275 = vsel %vm261, %v255, 0
        %v278 = vsel %vm261, %v256, 0
        %v281 = vsel %vm261, %v257, 0
        %v284 = vsel %vm261, %v258, 0
        %v287 = vsel %vm261, %v259, 0
        %289 = vmatprep.subr.mxu0 0.0
        %290 = vmatpush1.xpose.msra.mxu0 0.0
        %291 = vmatprep.subr.mxu0 0.0
        %292 = vmatpush1.xpose.msra.mxu0 0.0
        %293 = vmatprep.subr.mxu0 0.0
        %294 = vmatpush1.xpose.msra.mxu0 0.0
        %295 = vmatprep.subr.mxu0 0.0
        %296 = vmatpush1.xpose.msra.mxu0 0.0
        %297 = vmatprep.subr.mxu0 0.0
        %298 = vmatpush1.xpose.msra.mxu0 0.0
        %299 = vmatprep.subr.mxu0 0.0
        %300 = vmatpush1.xpose.msra.mxu0 0.0
        %301 = vmatprep.subr.mxu0 0.0
        %302 = vmatpush1.xpose.msra.mxu0 0.0
        %303 = vmatprep.subr.mxu0 0.0
        %304 = vmatpush1.xpose.msra.mxu0 0.0
        %305 = vmatprep.subr.mxu0 0.0
        %306 = vmatpush1.xpose.msra.mxu0 %v287
        %307 = vmatprep.subr.mxu0 0.0
        %308 = vmatpush1.xpose.msra.mxu0 %v284
        %309 = vmatprep.subr.mxu0 0.0
        %310 = vmatpush1.xpose.msra.mxu0 %v281
        %311 = vmatprep.subr.mxu0 0.0
        %312 = vmatpush1.xpose.msra.mxu0 %v278
        %313 = vmatprep.subr.mxu0 0.0
        %314 = vmatpush1.xpose.msra.mxu0 %v275
        %315 = vmatprep.subr.mxu0 0.0
        %316 = vmatpush1.xpose.msra.mxu0 %v272
        %317 = vmatprep.subr.mxu0 0.0
        %318 = vmatpush1.xpose.msra.mxu0 %v269
        %319 = vmatprep.subr.mxu0 0.0
        %320 = vmatpush1.xpose.msra.mxu0 %v266
        %321 = vmatprep.subr.mxu0 0.0
        %322 = vmatpush2.xpose.msra.mxu0 0.0
        %323 = vmatprep.subr.mxu0 0.0
        %324 = vmatpush2.xpose.msra.mxu0 0.0
        %325 = vmatprep.subr.mxu0 0.0
        %326 = vmatpush2.xpose.msra.mxu0 0.0
        %327 = vmatprep.subr.mxu0 0.0
        %328 = vmatpush2.xpose.msra.mxu0 0.0
        %329 = vmatprep.subr.mxu0 0.0
        %330 = vmatpush2.xpose.msra.mxu0 0.0
        %331 = vmatprep.subr.mxu0 0.0
        %332 = vmatpush2.xpose.msra.mxu0 0.0
        %333 = vmatprep.subr.mxu0 0.0
        %334 = vmatpush2.xpose.msra.mxu0 0.0
        %335 = vmatprep.subr.mxu0 0.0
        %336 = vmatpush2.xpose.msra.mxu0 0.0
        %337 = vmatprep.subr.mxu0 0.0
        %338 = vmatpush2.xpose.msra.mxu0 0.0
        %339 = vmatprep.subr.mxu0 0.0
        %340 = vmatpush2.xpose.msra.mxu0 0.0
        %341 = vmatprep.subr.mxu0 0.0
        %342 = vmatpush2.xpose.msra.mxu0 0.0
        %343 = vmatprep.subr.mxu0 0.0
        %344 = vmatpush2.xpose.msra.mxu0 0.0
        %345 = vmatprep.subr.mxu0 0.0
        %346 = vmatpush2.xpose.msra.mxu0 0.0
        %347 = vmatprep.subr.mxu0 0.0
        %348 = vmatpush2.xpose.msra.mxu0 0.0
        %349 = vmatprep.subr.mxu0 0.0
        %350 = vmatpush2.xpose.msra.mxu0 0.0
        %351 = vmatprep.subr.mxu0 0.0
        %352 = vmatpush2.xpose.msra.mxu0 0.0
        %353 = vmatprep.mubr.f32.mxu0 0.0
        %354 = vmatmul.mubr.f32.gmra.mxu0 %v263
        %v355 = vpop.f32.mrf.mxu0
        %v356 = vadd.f32 0.0, %v355
        %v357 = vpop.f32.mrf.mxu0
        %358 = vdwg.mxu0
        %v359 = vadd.f32 %v260, %v356
        %vm360 = vcmask 523264
        %361 = vst.msk [vmem:[#allocation2] sm:$0xff] %vm360, %v359
        // Predicated region
        $region37: #{advanced_linear.1} parent=31 // pred_check
          %p362 = pneg %p245
        $region38: #{advanced_linear.1} parent=31 // pred_check_branch
          %364 = sbr.rel (%p362) target = $region40
        $region39: #{advanced_linear.1} parent=31 // pred_region
          %v365 = vld [vmem:[#allocation2] sm:$0xff]
          %v366 = vld [vmem:[%s244] sm:$0x1]
          %v368 = vlaneseq
          %v369 = vshrl.u32 %v368, 7
          %v370 = vsub.s32 0, %v369
          %v371 = vrot.slane %v366, %v370
          %v373 = vadd.f32 %v365, %v371
          %374 = vst.msk [vmem:[%s225] sm:$0xff] %vm360, %v373
        $region40: #{advanced_linear.1} parent=31 // pred_fallthru
          _
        %s375 = sand.u32 %s128, 1
        %s376 = scalar_lea.sflag [#allocation4], %s375
        %s377 = sand.u32 %s128, 1
        %s378 = smul.addr %s377, 8
        %s379 = scalar_lea.vmem [#allocation3], %s378
        // Predicated region
        $region41: #{advanced_linear.1} parent=31 // pred_check
          %p380 = pneg %p138
        $region42: #{advanced_linear.1} parent=31 // pred_check_branch
          %382 = sbr.rel (%p380) target = $region44
        $region43: #{advanced_linear.1} parent=31 // pred_region
          %s384 = ssub.s32 128, 128
          %385 = vsyncadd %s376, %s384
          %s386 = sadd.s32 %s23, %s22
          %s387 = smul.addr %s386, 128
          %s388 = scalar_lea.hbm %s3, %s387
          %s390 = sshll.u32 %s379, 4
          %s391 = int_to_ptr.vmem [resolvable:$true] %s390
          %393 = dma.vmem_to_hbm [thread:$0]  %s391, 128, %s388, %s376
        $region44: #{advanced_linear.1} parent=31 // pred_fallthru
          _
      $region32: #{advanced_linear.1} parent=5 // pred_fallthru
        _
      %p394 = scmp.le.s32.totalorder 2, %s12
      // Predicated region
      $region45: #{advanced_linear.1} parent=5 // pred_check
        %p395 = pneg %p394
      $region46: #{advanced_linear.1} parent=5 // pred_check_branch
        %397 = sbr.rel (%p395) target = $region48
      $region47: #{advanced_linear.1} parent=5 // pred_region
        %s398 = ssub.s32 %s12, 2
        // Predicated region
        $region49: #{advanced_linear.1} parent=47 // pred_check
          %p399 = pneg %p144
        $region50: #{advanced_linear.1} parent=47 // pred_check_branch
          %401 = sbr.rel (%p399) target = $region52
        $region51: #{advanced_linear.1} parent=47 // pred_region
          %s402 = sand.u32 %s129, 1
          %s403 = scalar_lea.sflag [#allocation4], %s402
          %s404 = sand.u32 %s129, 1
          %s405 = smul.addr %s404, 8
          %s406 = scalar_lea.vmem [#allocation3], %s405
          %407 = dma.done %s403, 128
        $region52: #{advanced_linear.1} parent=47 // pred_fallthru
          _
      $region48: #{advanced_linear.1} parent=5 // pred_fallthru
        _
    $region6: #{advanced_linear.1} parent=1 // loop_footer
      %s16 = sadd.s32 1, %s12
    $region7: #{advanced_linear.1} parent=1 // loop_footer_branch
      %11 = sbr.rel target = $region3
    $region8: #{advanced_linear.1} parent=1 // loop_exit
      _
    %408 = vsyncpa [#allocation4], 1
    %s409 = scalar_lea.sflag [#allocation4], 1
    %410 = vsyncpa %s409, 1

</llo_original>
